<compile_context>
chip_gen: v7x
topology: tpu7x:2x2x1
jax: 0.10.0
libtpu: 0.0.40
codegen_flags: <defaults>
</compile_context>

<pallas_src>
import jax
import jax.numpy as jnp
from jax.experimental import pallas as pl
from jax.experimental.pallas import tpu as pltpu


def _round_up(n, m):
    return ((n + m - 1) // m) * m


def _dqn_kernel(x_ref, w1_ref, b1_ref, w2_ref, b2_ref, o_ref):
    # Cast x to bf16 in-kernel (no extra HBM pass in the wrapper).
    x = x_ref[...].astype(jnp.bfloat16)
    # fc1 on the MXU: bf16 operands, f32 accumulation.
    h = jnp.dot(x, w1_ref[...], preferred_element_type=jnp.float32)
    # Bias + ReLU in f32 (v5e VPU has no bf16 ALUs).
    h = jnp.maximum(h + b1_ref[...], 0.0)
    # Output head (out_actions padded to 8 lanes), bf16 operands on MXU.
    y = jnp.dot(h.astype(w2_ref.dtype), w2_ref[...],
                preferred_element_type=jnp.float32)
    o_ref[...] = (y + b2_ref[...]).astype(o_ref.dtype)


def prepare_params(w1_t, b1, w2_t, b2):
    """One-time parameter prep (hoisted out of the per-step forward).

    w1_t: (in_states, h1)        float32 (PyTorch fc1.weight, pre-transposed)
    b1:   (1, h1)                float32
    w2_t: (h1, out_actions)      float32 (PyTorch out.weight, pre-transposed)
    b2:   (1, out_actions)       float32
    """
    out_actions = w2_t.shape[1]
    out_pad = max(8, _round_up(out_actions, 8))
    w1_b = w1_t.astype(jnp.bfloat16)
    b1_f = b1.astype(jnp.float32)
    w2_b = jnp.pad(w2_t, ((0, 0), (0, out_pad - out_actions))).astype(jnp.bfloat16)
    b2_p = jnp.pad(b2, ((0, 0), (0, out_pad - out_actions))).astype(jnp.float32)
    return (w1_b, b1_f, w2_b, b2_p, out_actions)


def dqn_forward(x, params, *, b_tile=512):
    """Fused DQN forward.

    x:      (B, in_states) float32
    params: output of prepare_params
    returns (B, out_actions) float32
    """
    w1_b, b1_f, w2_b, b2_p, out_actions = params
    B, in_states = x.shape
    h1 = w1_b.shape[1]
    out_pad = w2_b.shape[1]

    # ---- batch tile: multiple of 8 sublanes; cap so large batches produce
    # >= 2 grid steps (lets "parallel" shard across both v7x TensorCores).
    half = _round_up(pl.cdiv(B, 2), 8)
    bt = max(8, min(_round_up(b_tile, 8), half))
    grid = (pl.cdiv(B, bt),)   # ragged last tile handled by Pallas

    # ---- explicit scoped-VMEM budget (double-buffered x/out tiles + weights),
    # capped well below the v7x 64 MiB per-TC physical VMEM.
    vmem_bytes = (
        2 * bt * in_states * 4            # x tiles (f32, double buffered)
        + in_states * h1 * 2 + h1 * 4     # W1 (bf16) + b1 (f32)
        + h1 * out_pad * 2 + out_pad * 4  # W2 (bf16) + b2 (f32)
        + 2 * bt * out_pad * 4            # out tiles (f32, double buffered)
    )
    vmem_limit = min(32 * 1024 * 1024, max(4 * 1024 * 1024, 4 * vmem_bytes))

    out_padded = pl.pallas_call(
        _dqn_kernel,
        out_shape=jax.ShapeDtypeStruct((B, out_pad), jnp.float32),
        grid=grid,
        in_specs=[
            pl.BlockSpec((bt, in_states), lambda i: (i, 0)),   # x tile
            pl.BlockSpec((in_states, h1), lambda i: (0, 0)),   # W1 (resident)
            pl.BlockSpec((1, h1), lambda i: (0, 0)),           # b1 (resident)
            pl.BlockSpec((h1, out_pad), lambda i: (0, 0)),     # W2 (resident)
            pl.BlockSpec((1, out_pad), lambda i: (0, 0)),      # b2 (resident)
        ],
        out_specs=pl.BlockSpec((bt, out_pad), lambda i: (i, 0)),
        compiler_params=pltpu.CompilerParams(
            dimension_semantics=("parallel",),
            vmem_limit_bytes=vmem_limit,
        ),
    )(x, w1_b, b1_f, w2_b, b2_p)

    if out_pad == out_actions:
        return out_padded
    return out_padded[:, :out_actions]


def init_params(key, in_states, h1_nodes, out_actions):
    """Deterministic init matching nn.Linear's default U(-1/sqrt(fan_in), +1/sqrt(fan_in))."""
    k1, k2, k3, k4 = jax.random.split(key, 4)
    lim1 = 1.0 / jnp.sqrt(jnp.float32(in_states))
    lim2 = 1.0 / jnp.sqrt(jnp.float32(h1_nodes))
    # PyTorch stores weight as (out, in); we build the transposed (in, out) directly.
    w1_t = jax.random.uniform(k1, (in_states, h1_nodes), jnp.float32, -lim1, lim1)
    b1 = jax.random.uniform(k2, (1, h1_nodes), jnp.float32, -lim1, lim1)
    w2_t = jax.random.uniform(k3, (h1_nodes, out_actions), jnp.float32, -lim2, lim2)
    b2 = jax.random.uniform(k4, (1, out_actions), jnp.float32, -lim2, lim2)
    return w1_t, b1, w2_t, b2


def _reference(x, w1_t, b1, w2_t, b2):
    # Same math as the kernel (bf16 matmul operands, f32 accumulate/elementwise).
    f32 = jnp.float32
    xb = x.astype(jnp.bfloat16).astype(f32)
    w1b = w1_t.astype(jnp.bfloat16).astype(f32)
    w2b = w2_t.astype(jnp.bfloat16).astype(f32)
    h = jnp.maximum(xb @ w1b + b1, 0.0)
    return h.astype(jnp.bfloat16).astype(f32) @ w2b + b2


if __name__ == "__main__":
    # FrozenLake 4x4: 16 states (one-hot input), 4 actions.
    batch, in_states, h1_nodes, out_actions = 2, 16, 32, 4

    key = jax.random.PRNGKey(0)
    kx, kp, kx2 = jax.random.split(key, 3)

    x = jax.random.normal(kx, (batch, in_states), jnp.float32)
    w1_t, b1, w2_t, b2 = init_params(kp, in_states, h1_nodes, out_actions)
    params = prepare_params(w1_t, b1, w2_t, b2)

    # Small (module-sized) batch.
    y = dqn_forward(x, params)
    y = jax.block_until_ready(y)
    ref = _reference(x, w1_t, b1, w2_t, b2)
    assert y.shape == (batch, out_actions)
    assert jnp.allclose(y, ref, atol=1e-4, rtol=1e-4)

    # Larger batch exercising the grid (>= 2 steps), ragged last tile, and
    # weight residency across grid steps.
    big_batch = 300
    x_big = jax.random.normal(kx2, (big_batch, in_states), jnp.float32)
    y_big = dqn_forward(x_big, params)
    y_big = jax.block_until_ready(y_big)
    ref_big = _reference(x_big, w1_t, b1, w2_t, b2)
    assert y_big.shape == (big_batch, out_actions)
    assert jnp.allclose(y_big, ref_big, atol=1e-4, rtol=1e-4)

    print("KERNEL_OK")
</pallas_src>

<mosaic_0001>
module attributes {stable_mosaic.version = 11 : i64} {
  func.func @_dqn_kernel(%arg0: i32, %arg1: memref<8x16xf32, #tpu.memory_space<vmem>>, %arg2: memref<16x32xbf16, #tpu.memory_space<vmem>>, %arg3: memref<1x32xf32, #tpu.memory_space<vmem>>, %arg4: memref<32x8xbf16, #tpu.memory_space<vmem>>, %arg5: memref<1x8xf32, #tpu.memory_space<vmem>>, %arg6: memref<8x8xf32, #tpu.memory_space<vmem>>) attributes {dimension_semantics = [#tpu.dimension_semantics<parallel>], iteration_bounds = array<i64: 1>, scalar_prefetch = 0 : i64, scratch_operands = 0 : i64, tpu.core_type = #tpu.core_type<tc>, window_params = [{transform_indices = @transform_0, window_bounds = array<i64: 8, 16>}, {pipeline_mode = #tpu.pipeline_mode<synchronous>, transform_indices = @transform_1, window_bounds = array<i64: 16, 32>}, {pipeline_mode = #tpu.pipeline_mode<synchronous>, transform_indices = @transform_2, window_bounds = array<i64: 1, 32>}, {pipeline_mode = #tpu.pipeline_mode<synchronous>, transform_indices = @transform_3, window_bounds = array<i64: 32, 8>}, {pipeline_mode = #tpu.pipeline_mode<synchronous>, transform_indices = @transform_4, window_bounds = array<i64: 1, 8>}, {transform_indices = @transform_5, window_bounds = array<i64: 8, 8>}]} {
    %c0 = arith.constant 0 : index
    %c0_0 = arith.constant 0 : index
    %0 = vector.load %arg1[%c0, %c0_0] : memref<8x16xf32, #tpu.memory_space<vmem>>, vector<8x16xf32>
    %1 = arith.truncf %0 : vector<8x16xf32> to vector<8x16xbf16>
    %c0_1 = arith.constant 0 : index
    %c0_2 = arith.constant 0 : index
    %2 = vector.load %arg2[%c0_1, %c0_2] : memref<16x32xbf16, #tpu.memory_space<vmem>>, vector<16x32xbf16>
    %cst = arith.constant dense<0.000000e+00> : vector<8x32xf32>
    %3 = tpu.matmul %1, %2, %cst {dimension_numbers = #tpu.dot_dimension_numbers<[1], [0], [0], [1], [0, 0, 1, 1], [], []>} : vector<8x16xbf16>, vector<16x32xbf16>, vector<8x32xf32> -> vector<8x32xf32>
    %c0_3 = arith.constant 0 : index
    %c0_4 = arith.constant 0 : index
    %4 = vector.load %arg3[%c0_3, %c0_4] : memref<1x32xf32, #tpu.memory_space<vmem>>, vector<1x32xf32>
    %5 = vector.broadcast %4 : vector<1x32xf32> to vector<8x32xf32>
    %6 = arith.addf %3, %5 : vector<8x32xf32>
    %cst_5 = arith.constant 0.000000e+00 : f32
    %7 = vector.broadcast %cst_5 : f32 to vector<8x32xf32>
    %8 = arith.maximumf %6, %7 : vector<8x32xf32>
    %9 = arith.truncf %8 : vector<8x32xf32> to vector<8x32xbf16>
    %c0_6 = arith.constant 0 : index
    %c0_7 = arith.constant 0 : index
    %10 = vector.load %arg4[%c0_6, %c0_7] : memref<32x8xbf16, #tpu.memory_space<vmem>>, vector<32x8xbf16>
    %cst_8 = arith.constant dense<0.000000e+00> : vector<8x8xf32>
    %11 = tpu.matmul %9, %10, %cst_8 {dimension_numbers = #tpu.dot_dimension_numbers<[1], [0], [0], [1], [0, 0, 1, 1], [], []>} : vector<8x32xbf16>, vector<32x8xbf16>, vector<8x8xf32> -> vector<8x8xf32>
    %c0_9 = arith.constant 0 : index
    %c0_10 = arith.constant 0 : index
    %12 = vector.load %arg5[%c0_9, %c0_10] : memref<1x8xf32, #tpu.memory_space<vmem>>, vector<1x8xf32>
    %13 = vector.broadcast %12 : vector<1x8xf32> to vector<8x8xf32>
    %14 = arith.addf %11, %13 : vector<8x8xf32>
    %c0_11 = arith.constant 0 : index
    %c0_12 = arith.constant 0 : index
    %15 = vector.load %arg6[%c0_11, %c0_12] : memref<8x8xf32, #tpu.memory_space<vmem>>, vector<8x8xf32>
    tpu.vector_store %arg6[%c0_11, %c0_12], %14 {strides = array<i32>} : memref<8x8xf32, #tpu.memory_space<vmem>>, vector<8x8xf32>,
    return
  }
  func.func @transform_0(%arg0: i32) -> (i32, i32) {
    %c0_i32 = arith.constant 0 : i32
    %c0_i32_0 = arith.constant 0 : i32
    return %arg0, %c0_i32 : i32, i32
  }
  func.func @transform_1(%arg0: i32) -> (i32, i32) {
    %c0_i32 = arith.constant 0 : i32
    %c0_i32_0 = arith.constant 0 : i32
    %c0_i32_1 = arith.constant 0 : i32
    return %c0_i32, %c0_i32_0 : i32, i32
  }
  func.func @transform_2(%arg0: i32) -> (i32, i32) {
    %c0_i32 = arith.constant 0 : i32
    %c0_i32_0 = arith.constant 0 : i32
    %c0_i32_1 = arith.constant 0 : i32
    return %c0_i32, %c0_i32_0 : i32, i32
  }
  func.func @transform_3(%arg0: i32) -> (i32, i32) {
    %c0_i32 = arith.constant 0 : i32
    %c0_i32_0 = arith.constant 0 : i32
    %c0_i32_1 = arith.constant 0 : i32
    return %c0_i32, %c0_i32_0 : i32, i32
  }
  func.func @transform_4(%arg0: i32) -> (i32, i32) {
    %c0_i32 = arith.constant 0 : i32
    %c0_i32_0 = arith.constant 0 : i32
    %c0_i32_1 = arith.constant 0 : i32
    return %c0_i32, %c0_i32_0 : i32, i32
  }
  func.func @transform_5(%arg0: i32) -> (i32, i32) {
    %c0_i32 = arith.constant 0 : i32
    %c0_i32_0 = arith.constant 0 : i32
    return %arg0, %c0_i32 : i32, i32
  }
}

</mosaic_0001>

<llo_original>
// kernel: tpu_custom_call.1
$region0: #{tpu_custom_call.1}
  #allocation0 [shape = 'u32[]', space=smem, size = 0x4, offset = 0x4, fixed_abs, tag = 'smem constant byte address 0x4 - core index']
  #allocation1 [shape = 'u32[144,128]{1,0:T(1,128)}', space=vmem, size = 0x12000, scoped, tag = 'internal scratch']
  %s0 = inlined_call_operand.vmem [shape: f32[2,16], index: 0, kind: input, shape index: {}]
  %s1 = inlined_call_operand.vmem [shape: bf16[16,32], index: 1, kind: input, shape index: {}]
  %s2 = inlined_call_operand.vmem [shape: f32[1,32], index: 2, kind: input, shape index: {}]
  %s3 = inlined_call_operand.vmem [shape: bf16[32,8], index: 3, kind: input, shape index: {}]
  %s4 = inlined_call_operand.vmem [shape: f32[1,8], index: 4, kind: input, shape index: {}]
  %s5 = inlined_call_operand.hbm [shape: f32[2,8], index: 5, kind: output, shape index: {}]
  %s6 = sld [smem:[#allocation0]]
  $region30: #{tpu_custom_call.1} parent=0
    _
  %s8 = ssub.s32 1, %s6
  %s9 = scalar_select 0, %s8, %s6
  $region1: #{tpu_custom_call.1} parent=0
    #allocation2 [shape = 'u8[4096]{0}', space=vmem, size = 0x1000, scoped, tag = 'output window, operand 0, single buffered']
    #allocation3 [shape = 's32[1]{0}', space=sflag, size = 0x4, scoped, tag = 'scoped memory for tpu_custom_call.1']
    %10 = vsyncpa [#allocation3], 0
    // Predicated region
    $region2: #{tpu_custom_call.1} parent=1 // pred_check
      _
    $region3: #{tpu_custom_call.1} parent=1 // pred_check_branch
      %12 = sbr.rel (0) target = $region5
    $region4: #{tpu_custom_call.1} parent=1 // pred_region
      _
    $region5: #{tpu_custom_call.1} parent=1 // pred_fallthru
      _
    // Predicated region
    $region6: #{tpu_custom_call.1} parent=1 // pred_check
      _
    $region7: #{tpu_custom_call.1} parent=1 // pred_check_branch
      %14 = sbr.rel (0) target = $region9
    $region8: #{tpu_custom_call.1} parent=1 // pred_region
      _
    $region9: #{tpu_custom_call.1} parent=1 // pred_fallthru
      _
    // Predicated region
    $region10: #{tpu_custom_call.1} parent=1 // pred_check
      _
    $region11: #{tpu_custom_call.1} parent=1 // pred_check_branch
      %16 = sbr.rel (0) target = $region13
    $region12: #{tpu_custom_call.1} parent=1 // pred_region
      _
    $region13: #{tpu_custom_call.1} parent=1 // pred_fallthru
      _
    // Predicated region
    $region14: #{tpu_custom_call.1} parent=1 // pred_check
      _
    $region15: #{tpu_custom_call.1} parent=1 // pred_check_branch
      %18 = sbr.rel (0) target = $region17
    $region16: #{tpu_custom_call.1} parent=1 // pred_region
      _
    $region17: #{tpu_custom_call.1} parent=1 // pred_fallthru
      _
    // Predicated region
    $region18: #{tpu_custom_call.1} parent=1 // pred_check
      _
    $region19: #{tpu_custom_call.1} parent=1 // pred_check_branch
      %20 = sbr.rel (0) target = $region21
    $region20: #{tpu_custom_call.1} parent=1 // pred_region
      _
    $region21: #{tpu_custom_call.1} parent=1 // pred_fallthru
      _
    %v22 = vld [vmem:[%s0] sm:$0xff]
    %v23 = vpack.c.bf16 %v22, %v22
    %v24 = vld [vmem:[%s1] sm:$0xf]
    %v25 = vld [vmem:[%s1 + $0x4] sm:$0xf]
    %v26 = vld [vmem:[%s2] sm:$0x1]
    %v28 = vlaneseq
    %v29 = vshrl.u32 %v28, 7
    %v30 = vsub.s32 0, %v29
    %v31 = vrot.slane %v26, %v30
    %v35 = vunpack.c.l.b16 %v24
    %v36 = vunpack.c.l.b16 %v25
    %v37 = vpack.c.b16 %v36, %v35
    %vm39 = vcmask 130048
    %v41 = vsel %vm39, %v23, 0
    %43 = vmatprep.subr.bf16.mxu0 0
    %44 = vmatpush1.bf16.msra.mxu0 %v37
    %45 = vmatprep.subr.bf16.mxu0 0
    %46 = vmatpush1.bf16.msra.mxu0 0
    %47 = vmatprep.subr.bf16.mxu0 0
    %48 = vmatpush1.bf16.msra.mxu0 0
    %49 = vmatprep.subr.bf16.mxu0 0
    %50 = vmatpush1.bf16.msra.mxu0 0
    %51 = vmatprep.subr.bf16.mxu0 0
    %52 = vmatpush1.bf16.msra.mxu0 0
    %53 = vmatprep.subr.bf16.mxu0 0
    %54 = vmatpush1.bf16.msra.mxu0 0
    %55 = vmatprep.subr.bf16.mxu0 0
    %56 = vmatpush1.bf16.msra.mxu0 0
    %57 = vmatprep.subr.bf16.mxu0 0
    %58 = vmatpush1.bf16.msra.mxu0 0
    %59 = vmatprep.subr.bf16.mxu0 0
    %60 = vmatpush1.bf16.msra.mxu0 0
    %61 = vmatprep.subr.bf16.mxu0 0
    %62 = vmatpush1.bf16.msra.mxu0 0
    %63 = vmatprep.subr.bf16.mxu0 0
    %64 = vmatpush1.bf16.msra.mxu0 0
    %65 = vmatprep.subr.bf16.mxu0 0
    %66 = vmatpush1.bf16.msra.mxu0 0
    %67 = vmatprep.subr.bf16.mxu0 0
    %68 = vmatpush1.bf16.msra.mxu0 0
    %69 = vmatprep.subr.bf16.mxu0 0
    %70 = vmatpush1.bf16.msra.mxu0 0
    %71 = vmatprep.subr.bf16.mxu0 0
    %72 = vmatpush1.bf16.msra.mxu0 0
    %73 = vmatprep.subr.bf16.mxu0 0
    %74 = vmatpush1.bf16.msra.mxu0 0
    %75 = vmatprep.mubr.bf16.mxu0 0
    %76 = vmatmul.mubr.bf16.gmra.mrb[0].mxu0 %v41
    %v77 = vpop.f32.mrb[0].mxu0
    %v78 = vadd.f32 %v31, %v77
    %v79 = vpop.f32.mrb[0].mxu0
    %v80 = vpop.f32.mrb[0].mxu0
    %v81 = vpop.f32.mrb[0].mxu0
    %82 = vdwg.mxu0
    %v83 = vmax.f32 %v78, 0.0
    %v84 = vpack.c.bf16 %v83, %v83
    %v85 = vld [vmem:[%s3] sm:$0xf]
    %v86 = vld [vmem:[%s3 + $0x4] sm:$0xf]
    %v87 = vld [vmem:[%s3 + $0x8] sm:$0xf]
    %v88 = vld [vmem:[%s3 + $0xc] sm:$0xf]
    %v89 = vld [vmem:[%s4] sm:$0x1]
    %v91 = vlaneseq
    %v92 = vshrl.u32 %v91, 7
    %v93 = vsub.s32 0, %v92
    %v94 = vrot.slane %v89, %v93
    %v100 = vunpack.c.l.b16 %v85
    %v101 = vunpack.c.l.b16 %v86
    %v102 = vunpack.c.l.b16 %v87
    %v103 = vunpack.c.l.b16 %v88
    %v104 = vpack.c.b16 %v101, %v100
    %v105 = vpack.c.b16 %v103, %v102
    %vm108 = vcmask 261120
    %v110 = vsel %vm108, %v84, 0
    %112 = vmatprep.subr.bf16.mxu0 0
    %113 = vmatpush1.bf16.msra.mxu0 %v104
    %114 = vmatprep.subr.bf16.mxu0 0
    %115 = vmatpush1.bf16.msra.mxu0 %v105
    %116 = vmatprep.subr.bf16.mxu0 0
    %117 = vmatpush1.bf16.msra.mxu0 0
    %118 = vmatprep.subr.bf16.mxu0 0
    %119 = vmatpush1.bf16.msra.mxu0 0
    %120 = vmatprep.subr.bf16.mxu0 0
    %121 = vmatpush1.bf16.msra.mxu0 0
    %122 = vmatprep.subr.bf16.mxu0 0
    %123 = vmatpush1.bf16.msra.mxu0 0
    %124 = vmatprep.subr.bf16.mxu0 0
    %125 = vmatpush1.bf16.msra.mxu0 0
    %126 = vmatprep.subr.bf16.mxu0 0
    %127 = vmatpush1.bf16.msra.mxu0 0
    %128 = vmatprep.subr.bf16.mxu0 0
    %129 = vmatpush1.bf16.msra.mxu0 0
    %130 = vmatprep.subr.bf16.mxu0 0
    %131 = vmatpush1.bf16.msra.mxu0 0
    %132 = vmatprep.subr.bf16.mxu0 0
    %133 = vmatpush1.bf16.msra.mxu0 0
    %134 = vmatprep.subr.bf16.mxu0 0
    %135 = vmatpush1.bf16.msra.mxu0 0
    %136 = vmatprep.subr.bf16.mxu0 0
    %137 = vmatpush1.bf16.msra.mxu0 0
    %138 = vmatprep.subr.bf16.mxu0 0
    %139 = vmatpush1.bf16.msra.mxu0 0
    %140 = vmatprep.subr.bf16.mxu0 0
    %141 = vmatpush1.bf16.msra.mxu0 0
    %142 = vmatprep.subr.bf16.mxu0 0
    %143 = vmatpush1.bf16.msra.mxu0 0
    %144 = vmatprep.mubr.bf16.mxu0 0
    %145 = vmatmul.mubr.bf16.gmra.mrb[0].mxu0 %v110
    %v146 = vpop.f32.mrb[0].mxu0
    %v147 = vadd.f32 %v94, %v146
    %v148 = vpop.f32.mrb[0].mxu0
    %v149 = vpop.f32.mrb[0].mxu0
    %v150 = vpop.f32.mrb[0].mxu0
    %151 = vdwg.mxu0
    %vm152 = vcmask 64512
    %153 = vst.msk [vmem:[#allocation2] sm:$0xff] %vm152, %v147
    // Predicated region
    $region22: #{tpu_custom_call.1} parent=1 // pred_check
      _
    $region23: #{tpu_custom_call.1} parent=1 // pred_check_branch
      %155 = sbr.rel (0) target = $region25
    $region24: #{tpu_custom_call.1} parent=1 // pred_region
      %s157 = ssub.s32 128, 32
      %158 = vsyncadd [#allocation3], %s157
      %s159 = sshll.u32 [#allocation2], 4
      %s160 = int_to_ptr.vmem [resolvable:$true] %s159
      %165 = dma.vmem_to_hbm [thread:$0]  %s160, 32, %s5, [#allocation3], 32, 32, 2
    $region25: #{tpu_custom_call.1} parent=1 // pred_fallthru
      _
    // Predicated region
    $region26: #{tpu_custom_call.1} parent=1 // pred_check
      _
    $region27: #{tpu_custom_call.1} parent=1 // pred_check_branch
      %167 = sbr.rel (0) target = $region29
    $region28: #{tpu_custom_call.1} parent=1 // pred_region
      %168 = dma.done [#allocation3], 128
    $region29: #{tpu_custom_call.1} parent=1 // pred_fallthru
      _
    %169 = vsyncpa [#allocation3], 1

</llo_original>
